<compile_context>
chip_gen: v7x
topology: tpu7x:2x2x1
jax: 0.10.0
libtpu: 0.0.40
codegen_flags: <defaults>
</compile_context>

<pallas_src>
import functools

import numpy as np
import jax
import jax.numpy as jnp
from jax.experimental import pallas as pl
from jax.experimental.pallas import tpu as pltpu


# --------------------------------------------------------------------------
# cached host-side constants (computed once per (H, W), never per forward call)
# --------------------------------------------------------------------------
@functools.lru_cache(maxsize=None)
def _dft_mats(n):
    """Orthonormal (symmetric) DFT matrix of size n as real/imag f32 planes."""
    k = np.arange(n)
    f = np.exp(-2j * np.pi * np.outer(k, k) / n) / np.sqrt(float(n))
    return (np.ascontiguousarray(f.real.astype(np.float32)),
            np.ascontiguousarray(f.imag.astype(np.float32)))


@functools.lru_cache(maxsize=None)
def _stage2_mats(w):
    """RHS matrices for the FW stage with the re/im interleave folded in.

    For complex B (carried as br, bi) and orthonormal DFT FW:
        y_slab = br @ g0 + bi @ g1                      # (rows, 2W)
        y_slab[:, 2v] = Re(B @ FW)[:, v],  y_slab[:, 2v+1] = Im(B @ FW)[:, v]
    so a trailing (..., W, 2) split reproduces the torch re/im layout for free.
    """
    fwr, fwi = _dft_mats(w)
    g0 = np.zeros((w, 2 * w), np.float32)
    g1 = np.zeros((w, 2 * w), np.float32)
    g0[:, 0::2] = fwr
    g0[:, 1::2] = fwi
    g1[:, 0::2] = -fwi
    g1[:, 1::2] = fwr
    return g0, g1


# --------------------------------------------------------------------------
# chip-aware sizing
# --------------------------------------------------------------------------
def _vmem_plan():
    """(resident-bytes planning budget, scoped vmem_limit_bytes) for this chip."""
    try:
        cap = int(getattr(pltpu.get_tpu_info(), "vmem_capacity_bytes", 0)) or (64 << 20)
    except Exception:                        # pragma: no cover - defensive fallback
        cap = 64 << 20                       # conservative: v7x per-core VMEM
    budget = min(cap // 2, 32 << 20)         # what _pick_coil_block may keep resident
    limit = min((cap * 3) // 4, 64 << 20)    # raised above v5e's ~16 MiB scoped default
    return budget, max(limit, budget)


def _num_tensorcores():
    """TensorCores a Pallas grid can shard "parallel" dims across."""
    try:
        kind = jax.devices()[0].device_kind.lower()
    except Exception:                        # pragma: no cover
        return 1
    if "lite" in kind or "v5e" in kind or "v6e" in kind:
        return 1                             # v5e / v6e: single TensorCore
    if "v4" in kind or "v5p" in kind or "v7" in kind:
        return 2                             # megacore (v4/v5p) and v7x: 2 TCs
    return 1


def _pick_coil_block(C, H, W, budget_bytes, max_block=8):
    """Coils per grid step: as fat as the VMEM budget allows (fewer grid steps
    amortize the ~0.35 us per-step overhead); constrained to leave >= 2 grid
    steps only on multi-TC chips; rounded so every BlockSpec stays on (8, 128)
    tile boundaries whenever the coil axis is actually tiled."""
    # double-buffered constants: x (2*H*W), FH re/im (2*H*H), g0/g1 (2*W*2W)
    const_bytes = 2 * 4 * (2 * H * W + 2 * H * H + 4 * W * W)
    per_coil = 4 * (8 * H * W       # s_re/s_im in + y out blocks, double-buffered
                    + 10 * H * W)   # in-kernel f32 temps (x tile, cr/ci, t1..t3, br/bi)
    cap = max(1, int((budget_bytes - const_bytes) // per_coil))
    cb = max(1, min(C, cap, max_block))
    if _num_tensorcores() >= 2 and C >= 2:
        cb = min(cb, pl.cdiv(C, 2))          # keep both TensorCores fed (v7x / megacore)

    def _legal(b):                           # BlockSpec tiling legality when cb < C
        return (b * W) % 128 == 0 and (b * H) % 8 == 0

    if cb < C and not _legal(cb):
        b = cb
        while b > 1 and not _legal(b):
            b -= 1
        # fall back to one grid step (block == full array, always legal); small
        # W implies a small per-coil footprint, so this stays within budget.
        cb = b if _legal(b) else C
    return cb


# --------------------------------------------------------------------------
# kernel
# --------------------------------------------------------------------------
def _make_kernel(cb, H, W):
    def kernel(xr_ref, xi_ref, sr_ref, si_ref, fhr_ref, fhi_ref,
               g0_ref, g1_ref, y_ref):
        # -- broadcast x across the coil block (coil-on-lanes layout) --------
        xr = xr_ref[...]                              # (H, W)
        xi = xi_ref[...]
        if cb > 1:                                    # lane-axis tile (VPU copies)
            xr = jnp.concatenate([xr] * cb, axis=1)   # (H, cb*W)
            xi = jnp.concatenate([xi] * cb, axis=1)

        # -- cimage = x * S_c for the whole block (VPU, complex pointwise) ---
        sr = sr_ref[...]                              # (H, cb*W), lane = c*W + w
        si = si_ref[...]
        cr = xr * sr - xi * si
        ci = xr * si + xi * sr

        # -- stage 1: B = FH @ cimage, batched over all cb coils at once -----
        # 3 MXU dots of (H, H) @ (H, cb*W): Gauss 3-multiply complex matmul.
        fhr = fhr_ref[...]
        fhi = fhi_ref[...]
        t1 = jnp.dot(fhr, cr, preferred_element_type=jnp.float32)
        t2 = jnp.dot(fhi, ci, preferred_element_type=jnp.float32)
        t3 = jnp.dot(fhr + fhi, cr + ci, preferred_element_type=jnp.float32)
        br = t1 - t2                                  # Re(B), (H, cb*W)
        bi = t3 - t1 - t2                             # Im(B), (H, cb*W)

        # -- stage 2: Y_c = B_c @ FW with the re/im interleave folded into
        # g0/g1; each coil's (H, W) @ (W, 2W) dots write straight into its rows
        # of the lane-dense (cb*H, 2W) output slab: no concat, no scratch. ----
        g0 = g0_ref[...]
        g1 = g1_ref[...]
        for c in range(cb):                           # static unroll, cb <= 8
            brc = br[:, c * W:(c + 1) * W]
            bic = bi[:, c * W:(c + 1) * W]
            y_ref[c * H:(c + 1) * H, :] = (
                jnp.dot(brc, g0, preferred_element_type=jnp.float32)
                + jnp.dot(bic, g1, preferred_element_type=jnp.float32))
        # NOTE: for tiny images (2W < 128) the store is lane-masked; fixing it
        # needs a coil-on-lanes output + wrapper HBM transpose -- irrelevant
        # once W >= 64, so not done here.
    return kernel


def _cartesian_pallas(x_re, x_im, s_re, s_im, fhr, fhi, g0, g1,
                      *, cb, H, W, Cpad, vmem_limit_bytes):
    grid = (Cpad // cb,)

    def const_spec(shape):
        # Same block index every grid step -> Pallas skips the re-DMA.
        # TODO(synk): single-buffer these (pl.Buffered(1)); the VMEM budget in
        # _pick_coil_block already charges the second buffer.
        return pl.BlockSpec(shape, lambda i: (0, 0))

    coil_spec = pl.BlockSpec((H, cb * W), lambda i: (0, i))
    out_spec = pl.BlockSpec((cb * H, 2 * W), lambda i: (i, 0))

    return pl.pallas_call(
        _make_kernel(cb, H, W),
        grid=grid,
        in_specs=[const_spec((H, W)), const_spec((H, W)),
                  coil_spec, coil_spec,
                  const_spec((H, H)), const_spec((H, H)),
                  const_spec((W, 2 * W)), const_spec((W, 2 * W))],
        out_specs=out_spec,
        out_shape=jax.ShapeDtypeStruct((Cpad * H, 2 * W), jnp.float32),
        compiler_params=pltpu.CompilerParams(
            dimension_semantics=("parallel",),
            vmem_limit_bytes=int(vmem_limit_bytes)),
    )(x_re, x_im, s_re, s_im, fhr, fhi, g0, g1)


# --------------------------------------------------------------------------
# public API
# --------------------------------------------------------------------------
def prepare_coil_sensitivities(coil_sensitivities, coil_block=None):
    """One-time setup for the static coil sensitivities (hoisted hot-path work).

    Splits re/im, zero-pads the coil axis to a multiple of the coil block and
    transposes to the coil-on-lanes layout (H, Cpad*W) the kernel consumes.
    Returns (s_re, s_im, meta) where meta holds the static launch config.
    """
    C, H, W, two = coil_sensitivities.shape
    assert two == 2, "expected a trailing re/im axis of size 2"
    budget, vmem_limit = _vmem_plan()
    cb = int(coil_block) if coil_block is not None else _pick_coil_block(C, H, W, budget)
    Cpad = pl.cdiv(C, cb) * cb
    s = coil_sensitivities
    if Cpad != C:
        s = jnp.concatenate([s, jnp.zeros((Cpad - C, H, W, 2), s.dtype)], axis=0)
    # (Cpad, H, W, 2) -> planar (2, H, Cpad*W); lane index = c*W + w.
    s = jnp.transpose(s, (3, 1, 0, 2)).reshape(2, H, Cpad * W)
    meta = dict(C=C, Cpad=Cpad, H=H, W=W, cb=cb, vmem_limit_bytes=vmem_limit)
    return s[0], s[1], meta


def cartesian_model_apply(x, s_re, s_im, *, C, Cpad, H, W, cb, vmem_limit_bytes):
    """Hot path.  x: (1, H, W, 2) f32; s_re/s_im from prepare_coil_sensitivities.

    Returns y of shape (C, H, W, 2) with y[c] == fft2(x * S_c, norm="ortho").
    """
    x0 = x[0]                                        # nt == 1 (rank-safe, no squeeze)
    x_re, x_im = x0[..., 0], x0[..., 1]
    fhr, fhi = _dft_mats(H)
    g0, g1 = _stage2_mats(W)
    y2d = _cartesian_pallas(x_re, x_im, s_re, s_im,
                            jnp.asarray(fhr), jnp.asarray(fhi),
                            jnp.asarray(g0), jnp.asarray(g1),
                            cb=cb, H=H, W=W, Cpad=Cpad,
                            vmem_limit_bytes=vmem_limit_bytes)
    # (Cpad*H, 2W) -> (C, H, W, 2): leading-row slice + trailing splits (free).
    return y2d[:C * H].reshape(C, H, W, 2)


def cartesian_model_forward(x, coil_sensitivities, coil_block=None):
    """Drop-in convenience path (prepares the static sensitivities per call).
    For repeated calls with fixed coils, hoist prepare_coil_sensitivities()."""
    s_re, s_im, meta = prepare_coil_sensitivities(coil_sensitivities, coil_block)
    return cartesian_model_apply(x, s_re, s_im, **meta)


# --------------------------------------------------------------------------
if __name__ == "__main__":
    C, H, W = 4, 16, 16
    key = jax.random.PRNGKey(0)
    k1, k2 = jax.random.split(key)

    coil_sensitivities = jax.random.normal(k1, (C, H, W, 2), dtype=jnp.float32)
    x = jax.random.normal(k2, (1, H, W, 2), dtype=jnp.float32)   # (nt=1, H, W, re/im)

    # setup-time preprocessing of the static sensitivities (hoisted out of the
    # per-call hot path), then jit only the hot path.
    s_re, s_im, meta = prepare_coil_sensitivities(coil_sensitivities)
    fwd = jax.jit(functools.partial(cartesian_model_apply, **meta))

    y = jax.block_until_ready(fwd(x, s_re, s_im))
    assert y.shape == (C, H, W, 2) and y.dtype == jnp.float32

    # reference: y[c] == fft2(x * S_c, norm="ortho")
    xc = x[0, ..., 0] + 1j * x[0, ..., 1]
    sc = coil_sensitivities[..., 0] + 1j * coil_sensitivities[..., 1]
    ref = jnp.fft.fft2(xc[None, :, :] * sc, norm="ortho")
    got = y[..., 0] + 1j * y[..., 1]
    assert jnp.allclose(got, ref, rtol=1e-3, atol=1e-3), "mismatch vs FFT reference"

    print("KERNEL_OK")
</pallas_src>

<mosaic_0001>
module attributes {stable_mosaic.version = 11 : i64} {
  func.func @kernel(%arg0: i32, %arg1: memref<16x16xf32, #tpu.memory_space<vmem>>, %arg2: memref<16x16xf32, #tpu.memory_space<vmem>>, %arg3: memref<16x64xf32, #tpu.memory_space<vmem>>, %arg4: memref<16x64xf32, #tpu.memory_space<vmem>>, %arg5: memref<16x16xf32, #tpu.memory_space<vmem>>, %arg6: memref<16x16xf32, #tpu.memory_space<vmem>>, %arg7: memref<16x32xf32, #tpu.memory_space<vmem>>, %arg8: memref<16x32xf32, #tpu.memory_space<vmem>>, %arg9: memref<64x32xf32, #tpu.memory_space<vmem>>) attributes {dimension_semantics = [#tpu.dimension_semantics<parallel>], iteration_bounds = array<i64: 1>, scalar_prefetch = 0 : i64, scratch_operands = 0 : i64, tpu.core_type = #tpu.core_type<tc>, window_params = [{pipeline_mode = #tpu.pipeline_mode<synchronous>, transform_indices = @transform_0, window_bounds = array<i64: 16, 16>}, {pipeline_mode = #tpu.pipeline_mode<synchronous>, transform_indices = @transform_1, window_bounds = array<i64: 16, 16>}, {transform_indices = @transform_2, window_bounds = array<i64: 16, 64>}, {transform_indices = @transform_3, window_bounds = array<i64: 16, 64>}, {pipeline_mode = #tpu.pipeline_mode<synchronous>, transform_indices = @transform_4, window_bounds = array<i64: 16, 16>}, {pipeline_mode = #tpu.pipeline_mode<synchronous>, transform_indices = @transform_5, window_bounds = array<i64: 16, 16>}, {pipeline_mode = #tpu.pipeline_mode<synchronous>, transform_indices = @transform_6, window_bounds = array<i64: 16, 32>}, {pipeline_mode = #tpu.pipeline_mode<synchronous>, transform_indices = @transform_7, window_bounds = array<i64: 16, 32>}, {transform_indices = @transform_8, window_bounds = array<i64: 64, 32>}]} {
    %c0 = arith.constant 0 : index
    %c0_0 = arith.constant 0 : index
    %0 = vector.load %arg1[%c0, %c0_0] : memref<16x16xf32, #tpu.memory_space<vmem>>, vector<16x16xf32>
    %c0_1 = arith.constant 0 : index
    %c0_2 = arith.constant 0 : index
    %1 = vector.load %arg2[%c0_1, %c0_2] : memref<16x16xf32, #tpu.memory_space<vmem>>, vector<16x16xf32>
    %2 = tpu.concatenate %0, %0, %0, %0 in 1 : vector<16x16xf32>, vector<16x16xf32>, vector<16x16xf32>, vector<16x16xf32> -> vector<16x64xf32>
    %3 = tpu.concatenate %1, %1, %1, %1 in 1 : vector<16x16xf32>, vector<16x16xf32>, vector<16x16xf32>, vector<16x16xf32> -> vector<16x64xf32>
    %c0_3 = arith.constant 0 : index
    %c0_4 = arith.constant 0 : index
    %4 = vector.load %arg3[%c0_3, %c0_4] : memref<16x64xf32, #tpu.memory_space<vmem>>, vector<16x64xf32>
    %c0_5 = arith.constant 0 : index
    %c0_6 = arith.constant 0 : index
    %5 = vector.load %arg4[%c0_5, %c0_6] : memref<16x64xf32, #tpu.memory_space<vmem>>, vector<16x64xf32>
    %6 = arith.mulf %2, %4 : vector<16x64xf32>
    %7 = arith.mulf %3, %5 : vector<16x64xf32>
    %8 = arith.subf %6, %7 : vector<16x64xf32>
    %9 = arith.mulf %2, %5 : vector<16x64xf32>
    %10 = arith.mulf %3, %4 : vector<16x64xf32>
    %11 = arith.addf %9, %10 : vector<16x64xf32>
    %c0_7 = arith.constant 0 : index
    %c0_8 = arith.constant 0 : index
    %12 = vector.load %arg5[%c0_7, %c0_8] : memref<16x16xf32, #tpu.memory_space<vmem>>, vector<16x16xf32>
    %c0_9 = arith.constant 0 : index
    %c0_10 = arith.constant 0 : index
    %13 = vector.load %arg6[%c0_9, %c0_10] : memref<16x16xf32, #tpu.memory_space<vmem>>, vector<16x16xf32>
    %cst = arith.constant dense<0.000000e+00> : vector<16x64xf32>
    %14 = tpu.matmul %12, %8, %cst {dimension_numbers = #tpu.dot_dimension_numbers<[1], [0], [0], [1], [0, 0, 1, 1], [], []>} : vector<16x16xf32>, vector<16x64xf32>, vector<16x64xf32> -> vector<16x64xf32>
    %cst_11 = arith.constant dense<0.000000e+00> : vector<16x64xf32>
    %15 = tpu.matmul %13, %11, %cst_11 {dimension_numbers = #tpu.dot_dimension_numbers<[1], [0], [0], [1], [0, 0, 1, 1], [], []>} : vector<16x16xf32>, vector<16x64xf32>, vector<16x64xf32> -> vector<16x64xf32>
    %16 = arith.addf %12, %13 : vector<16x16xf32>
    %17 = arith.addf %8, %11 : vector<16x64xf32>
    %cst_12 = arith.constant dense<0.000000e+00> : vector<16x64xf32>
    %18 = tpu.matmul %16, %17, %cst_12 {dimension_numbers = #tpu.dot_dimension_numbers<[1], [0], [0], [1], [0, 0, 1, 1], [], []>} : vector<16x16xf32>, vector<16x64xf32>, vector<16x64xf32> -> vector<16x64xf32>
    %19 = arith.subf %14, %15 : vector<16x64xf32>
    %20 = arith.subf %18, %14 : vector<16x64xf32>
    %21 = arith.subf %20, %15 : vector<16x64xf32>
    %c0_13 = arith.constant 0 : index
    %c0_14 = arith.constant 0 : index
    %22 = vector.load %arg7[%c0_13, %c0_14] : memref<16x32xf32, #tpu.memory_space<vmem>>, vector<16x32xf32>
    %c0_15 = arith.constant 0 : index
    %c0_16 = arith.constant 0 : index
    %23 = vector.load %arg8[%c0_15, %c0_16] : memref<16x32xf32, #tpu.memory_space<vmem>>, vector<16x32xf32>
    %24 = vector.extract_strided_slice %19 {offsets = [0, 0], sizes = [16, 16], strides = [1, 1]} : vector<16x64xf32> to vector<16x16xf32>
    %25 = vector.extract_strided_slice %21 {offsets = [0, 0], sizes = [16, 16], strides = [1, 1]} : vector<16x64xf32> to vector<16x16xf32>
    %cst_17 = arith.constant dense<0.000000e+00> : vector<16x32xf32>
    %26 = tpu.matmul %24, %22, %cst_17 {dimension_numbers = #tpu.dot_dimension_numbers<[1], [0], [0], [1], [0, 0, 1, 1], [], []>} : vector<16x16xf32>, vector<16x32xf32>, vector<16x32xf32> -> vector<16x32xf32>
    %cst_18 = arith.constant dense<0.000000e+00> : vector<16x32xf32>
    %27 = tpu.matmul %25, %23, %cst_18 {dimension_numbers = #tpu.dot_dimension_numbers<[1], [0], [0], [1], [0, 0, 1, 1], [], []>} : vector<16x16xf32>, vector<16x32xf32>, vector<16x32xf32> -> vector<16x32xf32>
    %28 = arith.addf %26, %27 : vector<16x32xf32>
    %c0_19 = arith.constant 0 : index
    %c0_20 = arith.constant 0 : index
    %29 = vector.load %arg9[%c0_19, %c0_20] : memref<64x32xf32, #tpu.memory_space<vmem>>, vector<16x32xf32>
    tpu.vector_store %arg9[%c0_19, %c0_20], %28 {strides = array<i32>} : memref<64x32xf32, #tpu.memory_space<vmem>>, vector<16x32xf32>,
    %30 = vector.extract_strided_slice %19 {offsets = [0, 16], sizes = [16, 16], strides = [1, 1]} : vector<16x64xf32> to vector<16x16xf32>
    %31 = vector.extract_strided_slice %21 {offsets = [0, 16], sizes = [16, 16], strides = [1, 1]} : vector<16x64xf32> to vector<16x16xf32>
    %cst_21 = arith.constant dense<0.000000e+00> : vector<16x32xf32>
    %32 = tpu.matmul %30, %22, %cst_21 {dimension_numbers = #tpu.dot_dimension_numbers<[1], [0], [0], [1], [0, 0, 1, 1], [], []>} : vector<16x16xf32>, vector<16x32xf32>, vector<16x32xf32> -> vector<16x32xf32>
    %cst_22 = arith.constant dense<0.000000e+00> : vector<16x32xf32>
    %33 = tpu.matmul %31, %23, %cst_22 {dimension_numbers = #tpu.dot_dimension_numbers<[1], [0], [0], [1], [0, 0, 1, 1], [], []>} : vector<16x16xf32>, vector<16x32xf32>, vector<16x32xf32> -> vector<16x32xf32>
    %34 = arith.addf %32, %33 : vector<16x32xf32>
    %c16 = arith.constant 16 : index
    %c0_23 = arith.constant 0 : index
    %35 = vector.load %arg9[%c16, %c0_23] : memref<64x32xf32, #tpu.memory_space<vmem>>, vector<16x32xf32>
    tpu.vector_store %arg9[%c16, %c0_23], %34 {strides = array<i32>} : memref<64x32xf32, #tpu.memory_space<vmem>>, vector<16x32xf32>,
    %36 = vector.extract_strided_slice %19 {offsets = [0, 32], sizes = [16, 16], strides = [1, 1]} : vector<16x64xf32> to vector<16x16xf32>
    %37 = vector.extract_strided_slice %21 {offsets = [0, 32], sizes = [16, 16], strides = [1, 1]} : vector<16x64xf32> to vector<16x16xf32>
    %cst_24 = arith.constant dense<0.000000e+00> : vector<16x32xf32>
    %38 = tpu.matmul %36, %22, %cst_24 {dimension_numbers = #tpu.dot_dimension_numbers<[1], [0], [0], [1], [0, 0, 1, 1], [], []>} : vector<16x16xf32>, vector<16x32xf32>, vector<16x32xf32> -> vector<16x32xf32>
    %cst_25 = arith.constant dense<0.000000e+00> : vector<16x32xf32>
    %39 = tpu.matmul %37, %23, %cst_25 {dimension_numbers = #tpu.dot_dimension_numbers<[1], [0], [0], [1], [0, 0, 1, 1], [], []>} : vector<16x16xf32>, vector<16x32xf32>, vector<16x32xf32> -> vector<16x32xf32>
    %40 = arith.addf %38, %39 : vector<16x32xf32>
    %c32 = arith.constant 32 : index
    %c0_26 = arith.constant 0 : index
    %41 = vector.load %arg9[%c32, %c0_26] : memref<64x32xf32, #tpu.memory_space<vmem>>, vector<16x32xf32>
    tpu.vector_store %arg9[%c32, %c0_26], %40 {strides = array<i32>} : memref<64x32xf32, #tpu.memory_space<vmem>>, vector<16x32xf32>,
    %42 = vector.extract_strided_slice %19 {offsets = [0, 48], sizes = [16, 16], strides = [1, 1]} : vector<16x64xf32> to vector<16x16xf32>
    %43 = vector.extract_strided_slice %21 {offsets = [0, 48], sizes = [16, 16], strides = [1, 1]} : vector<16x64xf32> to vector<16x16xf32>
    %cst_27 = arith.constant dense<0.000000e+00> : vector<16x32xf32>
    %44 = tpu.matmul %42, %22, %cst_27 {dimension_numbers = #tpu.dot_dimension_numbers<[1], [0], [0], [1], [0, 0, 1, 1], [], []>} : vector<16x16xf32>, vector<16x32xf32>, vector<16x32xf32> -> vector<16x32xf32>
    %cst_28 = arith.constant dense<0.000000e+00> : vector<16x32xf32>
    %45 = tpu.matmul %43, %23, %cst_28 {dimension_numbers = #tpu.dot_dimension_numbers<[1], [0], [0], [1], [0, 0, 1, 1], [], []>} : vector<16x16xf32>, vector<16x32xf32>, vector<16x32xf32> -> vector<16x32xf32>
    %46 = arith.addf %44, %45 : vector<16x32xf32>
    %c48 = arith.constant 48 : index
    %c0_29 = arith.constant 0 : index
    %47 = vector.load %arg9[%c48, %c0_29] : memref<64x32xf32, #tpu.memory_space<vmem>>, vector<16x32xf32>
    tpu.vector_store %arg9[%c48, %c0_29], %46 {strides = array<i32>} : memref<64x32xf32, #tpu.memory_space<vmem>>, vector<16x32xf32>,
    return
  }
  func.func @transform_0(%arg0: i32) -> (i32, i32) {
    %c0_i32 = arith.constant 0 : i32
    %c0_i32_0 = arith.constant 0 : i32
    %c0_i32_1 = arith.constant 0 : i32
    return %c0_i32, %c0_i32_0 : i32, i32
  }
  func.func @transform_1(%arg0: i32) -> (i32, i32) {
    %c0_i32 = arith.constant 0 : i32
    %c0_i32_0 = arith.constant 0 : i32
    %c0_i32_1 = arith.constant 0 : i32
    return %c0_i32, %c0_i32_0 : i32, i32
  }
  func.func @transform_2(%arg0: i32) -> (i32, i32) {
    %c0_i32 = arith.constant 0 : i32
    %c0_i32_0 = arith.constant 0 : i32
    return %c0_i32, %arg0 : i32, i32
  }
  func.func @transform_3(%arg0: i32) -> (i32, i32) {
    %c0_i32 = arith.constant 0 : i32
    %c0_i32_0 = arith.constant 0 : i32
    return %c0_i32, %arg0 : i32, i32
  }
  func.func @transform_4(%arg0: i32) -> (i32, i32) {
    %c0_i32 = arith.constant 0 : i32
    %c0_i32_0 = arith.constant 0 : i32
    %c0_i32_1 = arith.constant 0 : i32
    return %c0_i32, %c0_i32_0 : i32, i32
  }
  func.func @transform_5(%arg0: i32) -> (i32, i32) {
    %c0_i32 = arith.constant 0 : i32
    %c0_i32_0 = arith.constant 0 : i32
    %c0_i32_1 = arith.constant 0 : i32
    return %c0_i32, %c0_i32_0 : i32, i32
  }
  func.func @transform_6(%arg0: i32) -> (i32, i32) {
    %c0_i32 = arith.constant 0 : i32
    %c0_i32_0 = arith.constant 0 : i32
    %c0_i32_1 = arith.constant 0 : i32
    return %c0_i32, %c0_i32_0 : i32, i32
  }
  func.func @transform_7(%arg0: i32) -> (i32, i32) {
    %c0_i32 = arith.constant 0 : i32
    %c0_i32_0 = arith.constant 0 : i32
    %c0_i32_1 = arith.constant 0 : i32
    return %c0_i32, %c0_i32_0 : i32, i32
  }
  func.func @transform_8(%arg0: i32) -> (i32, i32) {
    %c0_i32 = arith.constant 0 : i32
    %c0_i32_0 = arith.constant 0 : i32
    return %arg0, %c0_i32 : i32, i32
  }
}

</mosaic_0001>

<llo_original>
// kernel: cartesian_model_apply.1
$region0: #{cartesian_model_apply.1}
  #allocation0 [shape = 'u32[]', space=smem, size = 0x4, offset = 0x4, fixed_abs, tag = 'smem constant byte address 0x4 - core index']
  #allocation1 [shape = 'u32[144,128]{1,0:T(1,128)}', space=vmem, size = 0x12000, scoped, tag = 'internal scratch']
  %s0 = inlined_call_operand.vmem [shape: f32[16,16], index: 0, kind: input, shape index: {}]
  %s1 = inlined_call_operand.vmem [shape: f32[16,16], index: 1, kind: input, shape index: {}]
  %s2 = inlined_call_operand.vmem [shape: f32[16,64], index: 2, kind: input, shape index: {}]
  %s3 = inlined_call_operand.vmem [shape: f32[16,64], index: 3, kind: input, shape index: {}]
  %s4 = inlined_call_operand.vmem [shape: f32[16,16], index: 4, kind: input, shape index: {}]
  %s5 = inlined_call_operand.vmem [shape: f32[16,16], index: 5, kind: input, shape index: {}]
  %s6 = inlined_call_operand.vmem [shape: f32[16,32], index: 6, kind: input, shape index: {}]
  %s7 = inlined_call_operand.vmem [shape: f32[16,32], index: 7, kind: input, shape index: {}]
  %s8 = inlined_call_operand.vmem [shape: f32[64,32], index: 8, kind: output, shape index: {}]
  %s9 = sld [smem:[#allocation0]]
  $region42: #{cartesian_model_apply.1} parent=0
    _
  %s11 = ssub.s32 1, %s9
  %s12 = scalar_select 0, %s11, %s9
  // Predicated region
  $region2: #{cartesian_model_apply.1} parent=0 // pred_check
    _
  $region3: #{cartesian_model_apply.1} parent=0 // pred_check_branch
    %14 = sbr.rel (0) target = $region5
  $region4: #{cartesian_model_apply.1} parent=0 // pred_region
    _
  $region5: #{cartesian_model_apply.1} parent=0 // pred_fallthru
    _
  // Predicated region
  $region6: #{cartesian_model_apply.1} parent=0 // pred_check
    _
  $region7: #{cartesian_model_apply.1} parent=0 // pred_check_branch
    %16 = sbr.rel (0) target = $region9
  $region8: #{cartesian_model_apply.1} parent=0 // pred_region
    _
  $region9: #{cartesian_model_apply.1} parent=0 // pred_fallthru
    _
  // Predicated region
  $region10: #{cartesian_model_apply.1} parent=0 // pred_check
    _
  $region11: #{cartesian_model_apply.1} parent=0 // pred_check_branch
    %18 = sbr.rel (0) target = $region13
  $region12: #{cartesian_model_apply.1} parent=0 // pred_region
    _
  $region13: #{cartesian_model_apply.1} parent=0 // pred_fallthru
    _
  // Predicated region
  $region14: #{cartesian_model_apply.1} parent=0 // pred_check
    _
  $region15: #{cartesian_model_apply.1} parent=0 // pred_check_branch
    %20 = sbr.rel (0) target = $region17
  $region16: #{cartesian_model_apply.1} parent=0 // pred_region
    _
  $region17: #{cartesian_model_apply.1} parent=0 // pred_fallthru
    _
  // Predicated region
  $region18: #{cartesian_model_apply.1} parent=0 // pred_check
    _
  $region19: #{cartesian_model_apply.1} parent=0 // pred_check_branch
    %22 = sbr.rel (0) target = $region21
  $region20: #{cartesian_model_apply.1} parent=0 // pred_region
    _
  $region21: #{cartesian_model_apply.1} parent=0 // pred_fallthru
    _
  // Predicated region
  $region22: #{cartesian_model_apply.1} parent=0 // pred_check
    _
  $region23: #{cartesian_model_apply.1} parent=0 // pred_check_branch
    %24 = sbr.rel (0) target = $region25
  $region24: #{cartesian_model_apply.1} parent=0 // pred_region
    _
  $region25: #{cartesian_model_apply.1} parent=0 // pred_fallthru
    _
  // Predicated region
  $region26: #{cartesian_model_apply.1} parent=0 // pred_check
    _
  $region27: #{cartesian_model_apply.1} parent=0 // pred_check_branch
    %26 = sbr.rel (0) target = $region29
  $region28: #{cartesian_model_apply.1} parent=0 // pred_region
    _
  $region29: #{cartesian_model_apply.1} parent=0 // pred_fallthru
    _
  // Predicated region
  $region30: #{cartesian_model_apply.1} parent=0 // pred_check
    _
  $region31: #{cartesian_model_apply.1} parent=0 // pred_check_branch
    %28 = sbr.rel (0) target = $region33
  $region32: #{cartesian_model_apply.1} parent=0 // pred_region
    _
  $region33: #{cartesian_model_apply.1} parent=0 // pred_fallthru
    _
  %v29 = vld [vmem:[%s0] sm:$0xff]
  %v30 = vld [vmem:[%s0 + $0x8] sm:$0xff]
  %v31 = vld [vmem:[%s1] sm:$0xff]
  %v32 = vld [vmem:[%s1 + $0x8] sm:$0xff]
  %35 = vrot.lane.b32.xlu0 %v29, 16
  %v36 = vpop.permute.xlu0 %35
  %37 = vrot.lane.b32.xlu0 %v30, 16
  %v38 = vpop.permute.xlu0 %37
  %41 = vrot.lane.b32.xlu0 %v29, 32
  %v42 = vpop.permute.xlu0 %41
  %43 = vrot.lane.b32.xlu0 %v30, 32
  %v44 = vpop.permute.xlu0 %43
  %47 = vrot.lane.b32.xlu0 %v29, 48
  %v48 = vpop.permute.xlu0 %47
  %49 = vrot.lane.b32.xlu0 %v30, 48
  %v50 = vpop.permute.xlu0 %49
  %vm53 = vcmask 130048
  %v54 = vsel %vm53, %v29, %v36
  %v55 = vsel %vm53, %v30, %v38
  %vm56 = vcmask 261120
  %v57 = vsel %vm56, %v54, %v42
  %v58 = vsel %vm56, %v55, %v44
  %vm59 = vcmask 392192
  %v60 = vsel %vm59, %v57, %v48
  %v61 = vsel %vm59, %v58, %v50
  %64 = vrot.lane.b32.xlu0 %v31, 16
  %v65 = vpop.permute.xlu0 %64
  %66 = vrot.lane.b32.xlu0 %v32, 16
  %v67 = vpop.permute.xlu0 %66
  %70 = vrot.lane.b32.xlu0 %v31, 32
  %v71 = vpop.permute.xlu0 %70
  %72 = vrot.lane.b32.xlu0 %v32, 32
  %v73 = vpop.permute.xlu0 %72
  %76 = vrot.lane.b32.xlu0 %v31, 48
  %v77 = vpop.permute.xlu0 %76
  %78 = vrot.lane.b32.xlu0 %v32, 48
  %v79 = vpop.permute.xlu0 %78
  %v82 = vsel %vm53, %v31, %v65
  %v83 = vsel %vm53, %v32, %v67
  %v84 = vsel %vm56, %v82, %v71
  %v85 = vsel %vm56, %v83, %v73
  %v86 = vsel %vm59, %v84, %v77
  %v87 = vsel %vm59, %v85, %v79
  %v88 = vld [vmem:[%s2] sm:$0xff]
  %v89 = vld [vmem:[%s2 + $0x8] sm:$0xff]
  %v90 = vld [vmem:[%s3] sm:$0xff]
  %v91 = vld [vmem:[%s3 + $0x8] sm:$0xff]
  %v92 = vmul.f32 %v60, %v88
  %v93 = vmul.f32 %v61, %v89
  %v94 = vmul.f32 %v86, %v90
  %v95 = vmul.f32 %v87, %v91
  %v96 = vsub.f32 %v92, %v94
  %v97 = vsub.f32 %v93, %v95
  %v98 = vmul.f32 %v60, %v90
  %v99 = vmul.f32 %v61, %v91
  %v100 = vmul.f32 %v86, %v88
  %v101 = vmul.f32 %v87, %v89
  %v102 = vadd.f32 %v98, %v100
  %v103 = vadd.f32 %v99, %v101
  %v104 = vld [vmem:[%s4] sm:$0xff]
  %v105 = vld [vmem:[%s4 + $0x8] sm:$0xff]
  %v106 = vld [vmem:[%s5] sm:$0xff]
  %v107 = vld [vmem:[%s5 + $0x8] sm:$0xff]
  %v109 = vsel %vm53, %v104, 0
  %v112 = vsel %vm53, %v105, 0
  %114 = vmatprep.subr.mxu0 0.0
  %115 = vmatpush1.msra.mxu0 %v96
  %116 = vmatprep.subr.mxu0 0.0
  %117 = vmatpush1.msra.mxu0 %v97
  %118 = vmatprep.subr.mxu0 0.0
  %119 = vmatpush1.msra.mxu0 0.0
  %120 = vmatprep.subr.mxu0 0.0
  %121 = vmatpush1.msra.mxu0 0.0
  %122 = vmatprep.subr.mxu0 0.0
  %123 = vmatpush1.msra.mxu0 0.0
  %124 = vmatprep.subr.mxu0 0.0
  %125 = vmatpush1.msra.mxu0 0.0
  %126 = vmatprep.subr.mxu0 0.0
  %127 = vmatpush1.msra.mxu0 0.0
  %128 = vmatprep.subr.mxu0 0.0
  %129 = vmatpush1.msra.mxu0 0.0
  %130 = vmatprep.subr.mxu0 0.0
  %131 = vmatpush1.msra.mxu0 0.0
  %132 = vmatprep.subr.mxu0 0.0
  %133 = vmatpush1.msra.mxu0 0.0
  %134 = vmatprep.subr.mxu0 0.0
  %135 = vmatpush1.msra.mxu0 0.0
  %136 = vmatprep.subr.mxu0 0.0
  %137 = vmatpush1.msra.mxu0 0.0
  %138 = vmatprep.subr.mxu0 0.0
  %139 = vmatpush1.msra.mxu0 0.0
  %140 = vmatprep.subr.mxu0 0.0
  %141 = vmatpush1.msra.mxu0 0.0
  %142 = vmatprep.subr.mxu0 0.0
  %143 = vmatpush1.msra.mxu0 0.0
  %144 = vmatprep.subr.mxu0 0.0
  %145 = vmatpush1.msra.mxu0 0.0
  %146 = vmatprep.subr.mxu0 0.0
  %147 = vmatpush1.msra.mxu0 0.0
  %148 = vmatprep.subr.mxu0 0.0
  %149 = vmatpush1.msra.mxu0 0.0
  %150 = vmatprep.subr.mxu0 0.0
  %151 = vmatpush1.msra.mxu0 0.0
  %152 = vmatprep.subr.mxu0 0.0
  %153 = vmatpush1.msra.mxu0 0.0
  %154 = vmatprep.subr.mxu0 0.0
  %155 = vmatpush1.msra.mxu0 0.0
  %156 = vmatprep.subr.mxu0 0.0
  %157 = vmatpush1.msra.mxu0 0.0
  %158 = vmatprep.subr.mxu0 0.0
  %159 = vmatpush1.msra.mxu0 0.0
  %160 = vmatprep.subr.mxu0 0.0
  %161 = vmatpush1.msra.mxu0 0.0
  %162 = vmatprep.subr.mxu0 0.0
  %163 = vmatpush1.msra.mxu0 0.0
  %164 = vmatprep.subr.mxu0 0.0
  %165 = vmatpush1.msra.mxu0 0.0
  %166 = vmatprep.subr.mxu0 0.0
  %167 = vmatpush1.msra.mxu0 0.0
  %168 = vmatprep.subr.mxu0 0.0
  %169 = vmatpush1.msra.mxu0 0.0
  %170 = vmatprep.subr.mxu0 0.0
  %171 = vmatpush1.msra.mxu0 0.0
  %172 = vmatprep.subr.mxu0 0.0
  %173 = vmatpush1.msra.mxu0 0.0
  %174 = vmatprep.subr.mxu0 0.0
  %175 = vmatpush1.msra.mxu0 0.0
  %176 = vmatprep.subr.mxu0 0.0
  %177 = vmatpush1.msra.mxu0 0.0
  %178 = vmatprep.mubr.f32.mxu0 0.0
  %179 = vmatmul.mubr.f32.gmra.mrb[0].mxu0 %v109
  %v180 = vpop.f32.mrb[0].mxu0
  %v181 = vadd.f32 0.0, %v180
  %v182 = vpop.f32.mrb[0].mxu0
  %183 = vmatprep.mubr.f32.mxu0 0.0
  %184 = vmatmul.mubr.f32.gmra.mrb[0].mxu0 %v112
  %v185 = vpop.f32.mrb[0].mxu0
  %v186 = vadd.f32 0.0, %v185
  %v187 = vpop.f32.mrb[0].mxu0
  %188 = vdwg.mxu0
  %v190 = vsel %vm53, %v106, 0
  %v193 = vsel %vm53, %v107, 0
  %195 = vmatprep.subr.mxu0 0.0
  %196 = vmatpush1.msra.mxu0 %v102
  %197 = vmatprep.subr.mxu0 0.0
  %198 = vmatpush1.msra.mxu0 %v103
  %199 = vmatprep.subr.mxu0 0.0
  %200 = vmatpush1.msra.mxu0 0.0
  %201 = vmatprep.subr.mxu0 0.0
  %202 = vmatpush1.msra.mxu0 0.0
  %203 = vmatprep.subr.mxu0 0.0
  %204 = vmatpush1.msra.mxu0 0.0
  %205 = vmatprep.subr.mxu0 0.0
  %206 = vmatpush1.msra.mxu0 0.0
  %207 = vmatprep.subr.mxu0 0.0
  %208 = vmatpush1.msra.mxu0 0.0
  %209 = vmatprep.subr.mxu0 0.0
  %210 = vmatpush1.msra.mxu0 0.0
  %211 = vmatprep.subr.mxu0 0.0
  %212 = vmatpush1.msra.mxu0 0.0
  %213 = vmatprep.subr.mxu0 0.0
  %214 = vmatpush1.msra.mxu0 0.0
  %215 = vmatprep.subr.mxu0 0.0
  %216 = vmatpush1.msra.mxu0 0.0
  %217 = vmatprep.subr.mxu0 0.0
  %218 = vmatpush1.msra.mxu0 0.0
  %219 = vmatprep.subr.mxu0 0.0
  %220 = vmatpush1.msra.mxu0 0.0
  %221 = vmatprep.subr.mxu0 0.0
  %222 = vmatpush1.msra.mxu0 0.0
  %223 = vmatprep.subr.mxu0 0.0
  %224 = vmatpush1.msra.mxu0 0.0
  %225 = vmatprep.subr.mxu0 0.0
  %226 = vmatpush1.msra.mxu0 0.0
  %227 = vmatprep.subr.mxu0 0.0
  %228 = vmatpush1.msra.mxu0 0.0
  %229 = vmatprep.subr.mxu0 0.0
  %230 = vmatpush1.msra.mxu0 0.0
  %231 = vmatprep.subr.mxu0 0.0
  %232 = vmatpush1.msra.mxu0 0.0
  %233 = vmatprep.subr.mxu0 0.0
  %234 = vmatpush1.msra.mxu0 0.0
  %235 = vmatprep.subr.mxu0 0.0
  %236 = vmatpush1.msra.mxu0 0.0
  %237 = vmatprep.subr.mxu0 0.0
  %238 = vmatpush1.msra.mxu0 0.0
  %239 = vmatprep.subr.mxu0 0.0
  %240 = vmatpush1.msra.mxu0 0.0
  %241 = vmatprep.subr.mxu0 0.0
  %242 = vmatpush1.msra.mxu0 0.0
  %243 = vmatprep.subr.mxu0 0.0
  %244 = vmatpush1.msra.mxu0 0.0
  %245 = vmatprep.subr.mxu0 0.0
  %246 = vmatpush1.msra.mxu0 0.0
  %247 = vmatprep.subr.mxu0 0.0
  %248 = vmatpush1.msra.mxu0 0.0
  %249 = vmatprep.subr.mxu0 0.0
  %250 = vmatpush1.msra.mxu0 0.0
  %251 = vmatprep.subr.mxu0 0.0
  %252 = vmatpush1.msra.mxu0 0.0
  %253 = vmatprep.subr.mxu0 0.0
  %254 = vmatpush1.msra.mxu0 0.0
  %255 = vmatprep.subr.mxu0 0.0
  %256 = vmatpush1.msra.mxu0 0.0
  %257 = vmatprep.subr.mxu0 0.0
  %258 = vmatpush1.msra.mxu0 0.0
  %259 = vmatprep.mubr.f32.mxu0 0.0
  %260 = vmatmul.mubr.f32.gmra.mrb[0].mxu0 %v190
  %v261 = vpop.f32.mrb[0].mxu0
  %v262 = vadd.f32 0.0, %v261
  %v263 = vpop.f32.mrb[0].mxu0
  %264 = vmatprep.mubr.f32.mxu0 0.0
  %265 = vmatmul.mubr.f32.gmra.mrb[0].mxu0 %v193
  %v266 = vpop.f32.mrb[0].mxu0
  %v267 = vadd.f32 0.0, %v266
  %v268 = vpop.f32.mrb[0].mxu0
  %269 = vdwg.mxu0
  %v270 = vadd.f32 %v104, %v106
  %v271 = vadd.f32 %v105, %v107
  %v272 = vadd.f32 %v96, %v102
  %v273 = vadd.f32 %v97, %v103
  %v275 = vsel %vm53, %v270, 0
  %v278 = vsel %vm53, %v271, 0
  %280 = vmatprep.subr.mxu0 0.0
  %281 = vmatpush1.msra.mxu0 %v272
  %282 = vmatprep.subr.mxu0 0.0
  %283 = vmatpush1.msra.mxu0 %v273
  %284 = vmatprep.subr.mxu0 0.0
  %285 = vmatpush1.msra.mxu0 0.0
  %286 = vmatprep.subr.mxu0 0.0
  %287 = vmatpush1.msra.mxu0 0.0
  %288 = vmatprep.subr.mxu0 0.0
  %289 = vmatpush1.msra.mxu0 0.0
  %290 = vmatprep.subr.mxu0 0.0
  %291 = vmatpush1.msra.mxu0 0.0
  %292 = vmatprep.subr.mxu0 0.0
  %293 = vmatpush1.msra.mxu0 0.0
  %294 = vmatprep.subr.mxu0 0.0
  %295 = vmatpush1.msra.mxu0 0.0
  %296 = vmatprep.subr.mxu0 0.0
  %297 = vmatpush1.msra.mxu0 0.0
  %298 = vmatprep.subr.mxu0 0.0
  %299 = vmatpush1.msra.mxu0 0.0
  %300 = vmatprep.subr.mxu0 0.0
  %301 = vmatpush1.msra.mxu0 0.0
  %302 = vmatprep.subr.mxu0 0.0
  %303 = vmatpush1.msra.mxu0 0.0
  %304 = vmatprep.subr.mxu0 0.0
  %305 = vmatpush1.msra.mxu0 0.0
  %306 = vmatprep.subr.mxu0 0.0
  %307 = vmatpush1.msra.mxu0 0.0
  %308 = vmatprep.subr.mxu0 0.0
  %309 = vmatpush1.msra.mxu0 0.0
  %310 = vmatprep.subr.mxu0 0.0
  %311 = vmatpush1.msra.mxu0 0.0
  %312 = vmatprep.subr.mxu0 0.0
  %313 = vmatpush1.msra.mxu0 0.0
  %314 = vmatprep.subr.mxu0 0.0
  %315 = vmatpush1.msra.mxu0 0.0
  %316 = vmatprep.subr.mxu0 0.0
  %317 = vmatpush1.msra.mxu0 0.0
  %318 = vmatprep.subr.mxu0 0.0
  %319 = vmatpush1.msra.mxu0 0.0
  %320 = vmatprep.subr.mxu0 0.0
  %321 = vmatpush1.msra.mxu0 0.0
  %322 = vmatprep.subr.mxu0 0.0
  %323 = vmatpush1.msra.mxu0 0.0
  %324 = vmatprep.subr.mxu0 0.0
  %325 = vmatpush1.msra.mxu0 0.0
  %326 = vmatprep.subr.mxu0 0.0
  %327 = vmatpush1.msra.mxu0 0.0
  %328 = vmatprep.subr.mxu0 0.0
  %329 = vmatpush1.msra.mxu0 0.0
  %330 = vmatprep.subr.mxu0 0.0
  %331 = vmatpush1.msra.mxu0 0.0
  %332 = vmatprep.subr.mxu0 0.0
  %333 = vmatpush1.msra.mxu0 0.0
  %334 = vmatprep.subr.mxu0 0.0
  %335 = vmatpush1.msra.mxu0 0.0
  %336 = vmatprep.subr.mxu0 0.0
  %337 = vmatpush1.msra.mxu0 0.0
  %338 = vmatprep.subr.mxu0 0.0
  %339 = vmatpush1.msra.mxu0 0.0
  %340 = vmatprep.subr.mxu0 0.0
  %341 = vmatpush1.msra.mxu0 0.0
  %342 = vmatprep.subr.mxu0 0.0
  %343 = vmatpush1.msra.mxu0 0.0
  %344 = vmatprep.mubr.f32.mxu0 0.0
  %345 = vmatmul.mubr.f32.gmra.mrb[0].mxu0 %v275
  %v346 = vpop.f32.mrb[0].mxu0
  %v347 = vadd.f32 0.0, %v346
  %v348 = vpop.f32.mrb[0].mxu0
  %349 = vmatprep.mubr.f32.mxu0 0.0
  %350 = vmatmul.mubr.f32.gmra.mrb[0].mxu0 %v278
  %v351 = vpop.f32.mrb[0].mxu0
  %v352 = vadd.f32 0.0, %v351
  %v353 = vpop.f32.mrb[0].mxu0
  %354 = vdwg.mxu0
  %v355 = vsub.f32 %v181, %v262
  %v356 = vsub.f32 %v186, %v267
  %v357 = vsub.f32 %v347, %v181
  %v358 = vsub.f32 %v352, %v186
  %v359 = vsub.f32 %v357, %v262
  %v360 = vsub.f32 %v358, %v267
  %v361 = vld [vmem:[%s6] sm:$0xff]
  %v362 = vld [vmem:[%s6 + $0x8] sm:$0xff]
  %v363 = vld [vmem:[%s7] sm:$0xff]
  %v364 = vld [vmem:[%s7 + $0x8] sm:$0xff]
  %v366 = vsel %vm53, %v359, 0
  %v369 = vsel %vm53, %v360, 0
  %371 = vmatprep.subr.mxu0 0.0
  %372 = vmatpush1.msra.mxu0 %v363
  %373 = vmatprep.subr.mxu0 0.0
  %374 = vmatpush1.msra.mxu0 %v364
  %375 = vmatprep.subr.mxu0 0.0
  %376 = vmatpush1.msra.mxu0 0.0
  %377 = vmatprep.subr.mxu0 0.0
  %378 = vmatpush1.msra.mxu0 0.0
  %379 = vmatprep.subr.mxu0 0.0
  %380 = vmatpush1.msra.mxu0 0.0
  %381 = vmatprep.subr.mxu0 0.0
  %382 = vmatpush1.msra.mxu0 0.0
  %383 = vmatprep.subr.mxu0 0.0
  %384 = vmatpush1.msra.mxu0 0.0
  %385 = vmatprep.subr.mxu0 0.0
  %386 = vmatpush1.msra.mxu0 0.0
  %387 = vmatprep.subr.mxu0 0.0
  %388 = vmatpush1.msra.mxu0 0.0
  %389 = vmatprep.subr.mxu0 0.0
  %390 = vmatpush1.msra.mxu0 0.0
  %391 = vmatprep.subr.mxu0 0.0
  %392 = vmatpush1.msra.mxu0 0.0
  %393 = vmatprep.subr.mxu0 0.0
  %394 = vmatpush1.msra.mxu0 0.0
  %395 = vmatprep.subr.mxu0 0.0
  %396 = vmatpush1.msra.mxu0 0.0
  %397 = vmatprep.subr.mxu0 0.0
  %398 = vmatpush1.msra.mxu0 0.0
  %399 = vmatprep.subr.mxu0 0.0
  %400 = vmatpush1.msra.mxu0 0.0
  %401 = vmatprep.subr.mxu0 0.0
  %402 = vmatpush1.msra.mxu0 0.0
  %403 = vmatprep.subr.mxu0 0.0
  %404 = vmatpush1.msra.mxu0 0.0
  %405 = vmatprep.subr.mxu0 0.0
  %406 = vmatpush1.msra.mxu0 0.0
  %407 = vmatprep.subr.mxu0 0.0
  %408 = vmatpush1.msra.mxu0 0.0
  %409 = vmatprep.subr.mxu0 0.0
  %410 = vmatpush1.msra.mxu0 0.0
  %411 = vmatprep.subr.mxu0 0.0
  %412 = vmatpush1.msra.mxu0 0.0
  %413 = vmatprep.subr.mxu0 0.0
  %414 = vmatpush1.msra.mxu0 0.0
  %415 = vmatprep.subr.mxu0 0.0
  %416 = vmatpush1.msra.mxu0 0.0
  %417 = vmatprep.subr.mxu0 0.0
  %418 = vmatpush1.msra.mxu0 0.0
  %419 = vmatprep.subr.mxu0 0.0
  %420 = vmatpush1.msra.mxu0 0.0
  %421 = vmatprep.subr.mxu0 0.0
  %422 = vmatpush1.msra.mxu0 0.0
  %423 = vmatprep.subr.mxu0 0.0
  %424 = vmatpush1.msra.mxu0 0.0
  %425 = vmatprep.subr.mxu0 0.0
  %426 = vmatpush1.msra.mxu0 0.0
  %427 = vmatprep.subr.mxu0 0.0
  %428 = vmatpush1.msra.mxu0 0.0
  %429 = vmatprep.subr.mxu0 0.0
  %430 = vmatpush1.msra.mxu0 0.0
  %431 = vmatprep.subr.mxu0 0.0
  %432 = vmatpush1.msra.mxu0 0.0
  %433 = vmatprep.subr.mxu0 0.0
  %434 = vmatpush1.msra.mxu0 0.0
  %435 = vmatprep.mubr.f32.mxu0 0.0
  %436 = vmatmul.mubr.f32.gmra.mrb[0].mxu0 %v366
  %v437 = vpop.f32.mrb[0].mxu0
  %v438 = vadd.f32 0.0, %v437
  %v439 = vpop.f32.mrb[0].mxu0
  %440 = vmatprep.mubr.f32.mxu0 0.0
  %441 = vmatmul.mubr.f32.gmra.mrb[0].mxu0 %v369
  %v442 = vpop.f32.mrb[0].mxu0
  %v443 = vadd.f32 0.0, %v442
  %v444 = vpop.f32.mrb[0].mxu0
  %445 = vdwg.mxu0
  %v447 = vsel %vm53, %v355, 0
  %v450 = vsel %vm53, %v356, 0
  %452 = vmatprep.subr.mxu0 0.0
  %453 = vmatpush1.msra.mxu0 %v361
  %454 = vmatprep.subr.mxu0 0.0
  %455 = vmatpush1.msra.mxu0 %v362
  %456 = vmatprep.subr.mxu0 0.0
  %457 = vmatpush1.msra.mxu0 0.0
  %458 = vmatprep.subr.mxu0 0.0
  %459 = vmatpush1.msra.mxu0 0.0
  %460 = vmatprep.subr.mxu0 0.0
  %461 = vmatpush1.msra.mxu0 0.0
  %462 = vmatprep.subr.mxu0 0.0
  %463 = vmatpush1.msra.mxu0 0.0
  %464 = vmatprep.subr.mxu0 0.0
  %465 = vmatpush1.msra.mxu0 0.0
  %466 = vmatprep.subr.mxu0 0.0
  %467 = vmatpush1.msra.mxu0 0.0
  %468 = vmatprep.subr.mxu0 0.0
  %469 = vmatpush1.msra.mxu0 0.0
  %470 = vmatprep.subr.mxu0 0.0
  %471 = vmatpush1.msra.mxu0 0.0
  %472 = vmatprep.subr.mxu0 0.0
  %473 = vmatpush1.msra.mxu0 0.0
  %474 = vmatprep.subr.mxu0 0.0
  %475 = vmatpush1.msra.mxu0 0.0
  %476 = vmatprep.subr.mxu0 0.0
  %477 = vmatpush1.msra.mxu0 0.0
  %478 = vmatprep.subr.mxu0 0.0
  %479 = vmatpush1.msra.mxu0 0.0
  %480 = vmatprep.subr.mxu0 0.0
  %481 = vmatpush1.msra.mxu0 0.0
  %482 = vmatprep.subr.mxu0 0.0
  %483 = vmatpush1.msra.mxu0 0.0
  %484 = vmatprep.subr.mxu0 0.0
  %485 = vmatpush1.msra.mxu0 0.0
  %486 = vmatprep.subr.mxu0 0.0
  %487 = vmatpush1.msra.mxu0 0.0
  %488 = vmatprep.subr.mxu0 0.0
  %489 = vmatpush1.msra.mxu0 0.0
  %490 = vmatprep.subr.mxu0 0.0
  %491 = vmatpush1.msra.mxu0 0.0
  %492 = vmatprep.subr.mxu0 0.0
  %493 = vmatpush1.msra.mxu0 0.0
  %494 = vmatprep.subr.mxu0 0.0
  %495 = vmatpush1.msra.mxu0 0.0
  %496 = vmatprep.subr.mxu0 0.0
  %497 = vmatpush1.msra.mxu0 0.0
  %498 = vmatprep.subr.mxu0 0.0
  %499 = vmatpush1.msra.mxu0 0.0
  %500 = vmatprep.subr.mxu0 0.0
  %501 = vmatpush1.msra.mxu0 0.0
  %502 = vmatprep.subr.mxu0 0.0
  %503 = vmatpush1.msra.mxu0 0.0
  %504 = vmatprep.subr.mxu0 0.0
  %505 = vmatpush1.msra.mxu0 0.0
  %506 = vmatprep.subr.mxu0 0.0
  %507 = vmatpush1.msra.mxu0 0.0
  %508 = vmatprep.subr.mxu0 0.0
  %509 = vmatpush1.msra.mxu0 0.0
  %510 = vmatprep.subr.mxu0 0.0
  %511 = vmatpush1.msra.mxu0 0.0
  %512 = vmatprep.subr.mxu0 0.0
  %513 = vmatpush1.msra.mxu0 0.0
  %514 = vmatprep.subr.mxu0 0.0
  %515 = vmatpush1.msra.mxu0 0.0
  %516 = vmatprep.mubr.f32.mxu0 0.0
  %517 = vmatmul.mubr.f32.gmra.mrb[0].mxu0 %v447
  %v518 = vpop.f32.mrb[0].mxu0
  %v519 = vadd.f32 %v438, %v518
  %v520 = vpop.f32.mrb[0].mxu0
  %521 = vmatprep.mubr.f32.mxu0 0.0
  %522 = vmatmul.mubr.f32.gmra.mrb[0].mxu0 %v450
  %v523 = vpop.f32.mrb[0].mxu0
  %v524 = vadd.f32 %v443, %v523
  %v525 = vpop.f32.mrb[0].mxu0
  %526 = vdwg.mxu0
  %527 = vst.msk [vmem:[%s8] sm:$0xff] %vm56, %v519
  %528 = vst.msk [vmem:[%s8 + $0x8] sm:$0xff] %vm56, %v524
  %529 = vrot.lane.b32.xlu0 %v359, 112
  %v530 = vpop.permute.xlu0 %529
  %531 = vrot.lane.b32.xlu0 %v360, 112
  %v532 = vpop.permute.xlu0 %531
  %v533 = vsel %vm53, %v530, 0
  %v535 = vsel %vm53, %v532, 0
  %537 = vmatprep.subr.mxu0 0.0
  %538 = vmatpush1.msra.mxu0 %v363
  %539 = vmatprep.subr.mxu0 0.0
  %540 = vmatpush1.msra.mxu0 %v364
  %541 = vmatprep.subr.mxu0 0.0
  %542 = vmatpush1.msra.mxu0 0.0
  %543 = vmatprep.subr.mxu0 0.0
  %544 = vmatpush1.msra.mxu0 0.0
  %545 = vmatprep.subr.mxu0 0.0
  %546 = vmatpush1.msra.mxu0 0.0
  %547 = vmatprep.subr.mxu0 0.0
  %548 = vmatpush1.msra.mxu0 0.0
  %549 = vmatprep.subr.mxu0 0.0
  %550 = vmatpush1.msra.mxu0 0.0
  %551 = vmatprep.subr.mxu0 0.0
  %552 = vmatpush1.msra.mxu0 0.0
  %553 = vmatprep.subr.mxu0 0.0
  %554 = vmatpush1.msra.mxu0 0.0
  %555 = vmatprep.subr.mxu0 0.0
  %556 = vmatpush1.msra.mxu0 0.0
  %557 = vmatprep.subr.mxu0 0.0
  %558 = vmatpush1.msra.mxu0 0.0
  %559 = vmatprep.subr.mxu0 0.0
  %560 = vmatpush1.msra.mxu0 0.0
  %561 = vmatprep.subr.mxu0 0.0
  %562 = vmatpush1.msra.mxu0 0.0
  %563 = vmatprep.subr.mxu0 0.0
  %564 = vmatpush1.msra.mxu0 0.0
  %565 = vmatprep.subr.mxu0 0.0
  %566 = vmatpush1.msra.mxu0 0.0
  %567 = vmatprep.subr.mxu0 0.0
  %568 = vmatpush1.msra.mxu0 0.0
  %569 = vmatprep.subr.mxu0 0.0
  %570 = vmatpush1.msra.mxu0 0.0
  %571 = vmatprep.subr.mxu0 0.0
  %572 = vmatpush1.msra.mxu0 0.0
  %573 = vmatprep.subr.mxu0 0.0
  %574 = vmatpush1.msra.mxu0 0.0
  %575 = vmatprep.subr.mxu0 0.0
  %576 = vmatpush1.msra.mxu0 0.0
  %577 = vmatprep.subr.mxu0 0.0
  %578 = vmatpush1.msra.mxu0 0.0
  %579 = vmatprep.subr.mxu0 0.0
  %580 = vmatpush1.msra.mxu0 0.0
  %581 = vmatprep.subr.mxu0 0.0
  %582 = vmatpush1.msra.mxu0 0.0
  %583 = vmatprep.subr.mxu0 0.0
  %584 = vmatpush1.msra.mxu0 0.0
  %585 = vmatprep.subr.mxu0 0.0
  %586 = vmatpush1.msra.mxu0 0.0
  %587 = vmatprep.subr.mxu0 0.0
  %588 = vmatpush1.msra.mxu0 0.0
  %589 = vmatprep.subr.mxu0 0.0
  %590 = vmatpush1.msra.mxu0 0.0
  %591 = vmatprep.subr.mxu0 0.0
  %592 = vmatpush1.msra.mxu0 0.0
  %593 = vmatprep.subr.mxu0 0.0
  %594 = vmatpush1.msra.mxu0 0.0
  %595 = vmatprep.subr.mxu0 0.0
  %596 = vmatpush1.msra.mxu0 0.0
  %597 = vmatprep.subr.mxu0 0.0
  %598 = vmatpush1.msra.mxu0 0.0
  %599 = vmatprep.subr.mxu0 0.0
  %600 = vmatpush1.msra.mxu0 0.0
  %601 = vmatprep.mubr.f32.mxu0 0.0
  %602 = vmatmul.mubr.f32.gmra.mrb[0].mxu0 %v533
  %v603 = vpop.f32.mrb[0].mxu0
  %v604 = vadd.f32 0.0, %v603
  %v605 = vpop.f32.mrb[0].mxu0
  %606 = vmatprep.mubr.f32.mxu0 0.0
  %607 = vmatmul.mubr.f32.gmra.mrb[0].mxu0 %v535
  %v608 = vpop.f32.mrb[0].mxu0
  %v609 = vadd.f32 0.0, %v608
  %v610 = vpop.f32.mrb[0].mxu0
  %611 = vdwg.mxu0
  %612 = vrot.lane.b32.xlu0 %v355, 112
  %v613 = vpop.permute.xlu0 %612
  %614 = vrot.lane.b32.xlu0 %v356, 112
  %v615 = vpop.permute.xlu0 %614
  %v616 = vsel %vm53, %v613, 0
  %v618 = vsel %vm53, %v615, 0
  %620 = vmatprep.subr.mxu0 0.0
  %621 = vmatpush1.msra.mxu0 %v361
  %622 = vmatprep.subr.mxu0 0.0
  %623 = vmatpush1.msra.mxu0 %v362
  %624 = vmatprep.subr.mxu0 0.0
  %625 = vmatpush1.msra.mxu0 0.0
  %626 = vmatprep.subr.mxu0 0.0
  %627 = vmatpush1.msra.mxu0 0.0
  %628 = vmatprep.subr.mxu0 0.0
  %629 = vmatpush1.msra.mxu0 0.0
  %630 = vmatprep.subr.mxu0 0.0
  %631 = vmatpush1.msra.mxu0 0.0
  %632 = vmatprep.subr.mxu0 0.0
  %633 = vmatpush1.msra.mxu0 0.0
  %634 = vmatprep.subr.mxu0 0.0
  %635 = vmatpush1.msra.mxu0 0.0
  %636 = vmatprep.subr.mxu0 0.0
  %637 = vmatpush1.msra.mxu0 0.0
  %638 = vmatprep.subr.mxu0 0.0
  %639 = vmatpush1.msra.mxu0 0.0
  %640 = vmatprep.subr.mxu0 0.0
  %641 = vmatpush1.msra.mxu0 0.0
  %642 = vmatprep.subr.mxu0 0.0
  %643 = vmatpush1.msra.mxu0 0.0
  %644 = vmatprep.subr.mxu0 0.0
  %645 = vmatpush1.msra.mxu0 0.0
  %646 = vmatprep.subr.mxu0 0.0
  %647 = vmatpush1.msra.mxu0 0.0
  %648 = vmatprep.subr.mxu0 0.0
  %649 = vmatpush1.msra.mxu0 0.0
  %650 = vmatprep.subr.mxu0 0.0
  %651 = vmatpush1.msra.mxu0 0.0
  %652 = vmatprep.subr.mxu0 0.0
  %653 = vmatpush1.msra.mxu0 0.0
  %654 = vmatprep.subr.mxu0 0.0
  %655 = vmatpush1.msra.mxu0 0.0
  %656 = vmatprep.subr.mxu0 0.0
  %657 = vmatpush1.msra.mxu0 0.0
  %658 = vmatprep.subr.mxu0 0.0
  %659 = vmatpush1.msra.mxu0 0.0
  %660 = vmatprep.subr.mxu0 0.0
  %661 = vmatpush1.msra.mxu0 0.0
  %662 = vmatprep.subr.mxu0 0.0
  %663 = vmatpush1.msra.mxu0 0.0
  %664 = vmatprep.subr.mxu0 0.0
  %665 = vmatpush1.msra.mxu0 0.0
  %666 = vmatprep.subr.mxu0 0.0
  %667 = vmatpush1.msra.mxu0 0.0
  %668 = vmatprep.subr.mxu0 0.0
  %669 = vmatpush1.msra.mxu0 0.0
  %670 = vmatprep.subr.mxu0 0.0
  %671 = vmatpush1.msra.mxu0 0.0
  %672 = vmatprep.subr.mxu0 0.0
  %673 = vmatpush1.msra.mxu0 0.0
  %674 = vmatprep.subr.mxu0 0.0
  %675 = vmatpush1.msra.mxu0 0.0
  %676 = vmatprep.subr.mxu0 0.0
  %677 = vmatpush1.msra.mxu0 0.0
  %678 = vmatprep.subr.mxu0 0.0
  %679 = vmatpush1.msra.mxu0 0.0
  %680 = vmatprep.subr.mxu0 0.0
  %681 = vmatpush1.msra.mxu0 0.0
  %682 = vmatprep.subr.mxu0 0.0
  %683 = vmatpush1.msra.mxu0 0.0
  %684 = vmatprep.mubr.f32.mxu0 0.0
  %685 = vmatmul.mubr.f32.gmra.mrb[0].mxu0 %v616
  %v686 = vpop.f32.mrb[0].mxu0
  %v687 = vadd.f32 %v604, %v686
  %v688 = vpop.f32.mrb[0].mxu0
  %689 = vmatprep.mubr.f32.mxu0 0.0
  %690 = vmatmul.mubr.f32.gmra.mrb[0].mxu0 %v618
  %v691 = vpop.f32.mrb[0].mxu0
  %v692 = vadd.f32 %v609, %v691
  %v693 = vpop.f32.mrb[0].mxu0
  %694 = vdwg.mxu0
  %695 = vst.msk [vmem:[%s8 + $0x10] sm:$0xff] %vm56, %v687
  %696 = vst.msk [vmem:[%s8 + $0x18] sm:$0xff] %vm56, %v692
  %697 = vrot.lane.b32.xlu0 %v359, 96
  %v698 = vpop.permute.xlu0 %697
  %699 = vrot.lane.b32.xlu0 %v360, 96
  %v700 = vpop.permute.xlu0 %699
  %v701 = vsel %vm53, %v698, 0
  %v703 = vsel %vm53, %v700, 0
  %705 = vmatprep.subr.mxu0 0.0
  %706 = vmatpush1.msra.mxu0 %v363
  %707 = vmatprep.subr.mxu0 0.0
  %708 = vmatpush1.msra.mxu0 %v364
  %709 = vmatprep.subr.mxu0 0.0
  %710 = vmatpush1.msra.mxu0 0.0
  %711 = vmatprep.subr.mxu0 0.0
  %712 = vmatpush1.msra.mxu0 0.0
  %713 = vmatprep.subr.mxu0 0.0
  %714 = vmatpush1.msra.mxu0 0.0
  %715 = vmatprep.subr.mxu0 0.0
  %716 = vmatpush1.msra.mxu0 0.0
  %717 = vmatprep.subr.mxu0 0.0
  %718 = vmatpush1.msra.mxu0 0.0
  %719 = vmatprep.subr.mxu0 0.0
  %720 = vmatpush1.msra.mxu0 0.0
  %721 = vmatprep.subr.mxu0 0.0
  %722 = vmatpush1.msra.mxu0 0.0
  %723 = vmatprep.subr.mxu0 0.0
  %724 = vmatpush1.msra.mxu0 0.0
  %725 = vmatprep.subr.mxu0 0.0
  %726 = vmatpush1.msra.mxu0 0.0
  %727 = vmatprep.subr.mxu0 0.0
  %728 = vmatpush1.msra.mxu0 0.0
  %729 = vmatprep.subr.mxu0 0.0
  %730 = vmatpush1.msra.mxu0 0.0
  %731 = vmatprep.subr.mxu0 0.0
  %732 = vmatpush1.msra.mxu0 0.0
  %733 = vmatprep.subr.mxu0 0.0
  %734 = vmatpush1.msra.mxu0 0.0
  %735 = vmatprep.subr.mxu0 0.0
  %736 = vmatpush1.msra.mxu0 0.0
  %737 = vmatprep.subr.mxu0 0.0
  %738 = vmatpush1.msra.mxu0 0.0
  %739 = vmatprep.subr.mxu0 0.0
  %740 = vmatpush1.msra.mxu0 0.0
  %741 = vmatprep.subr.mxu0 0.0
  %742 = vmatpush1.msra.mxu0 0.0
  %743 = vmatprep.subr.mxu0 0.0
  %744 = vmatpush1.msra.mxu0 0.0
  %745 = vmatprep.subr.mxu0 0.0
  %746 = vmatpush1.msra.mxu0 0.0
  %747 = vmatprep.subr.mxu0 0.0
  %748 = vmatpush1.msra.mxu0 0.0
  %749 = vmatprep.subr.mxu0 0.0
  %750 = vmatpush1.msra.mxu0 0.0
  %751 = vmatprep.subr.mxu0 0.0
  %752 = vmatpush1.msra.mxu0 0.0
  %753 = vmatprep.subr.mxu0 0.0
  %754 = vmatpush1.msra.mxu0 0.0
  %755 = vmatprep.subr.mxu0 0.0
  %756 = vmatpush1.msra.mxu0 0.0
  %757 = vmatprep.subr.mxu0 0.0
  %758 = vmatpush1.msra.mxu0 0.0
  %759 = vmatprep.subr.mxu0 0.0
  %760 = vmatpush1.msra.mxu0 0.0
  %761 = vmatprep.subr.mxu0 0.0
  %762 = vmatpush1.msra.mxu0 0.0
  %763 = vmatprep.subr.mxu0 0.0
  %764 = vmatpush1.msra.mxu0 0.0
  %765 = vmatprep.subr.mxu0 0.0
  %766 = vmatpush1.msra.mxu0 0.0
  %767 = vmatprep.subr.mxu0 0.0
  %768 = vmatpush1.msra.mxu0 0.0
  %769 = vmatprep.mubr.f32.mxu0 0.0
  %770 = vmatmul.mubr.f32.gmra.mrb[0].mxu0 %v701
  %v771 = vpop.f32.mrb[0].mxu0
  %v772 = vadd.f32 0.0, %v771
  %v773 = vpop.f32.mrb[0].mxu0
  %774 = vmatprep.mubr.f32.mxu0 0.0
  %775 = vmatmul.mubr.f32.gmra.mrb[0].mxu0 %v703
  %v776 = vpop.f32.mrb[0].mxu0
  %v777 = vadd.f32 0.0, %v776
  %v778 = vpop.f32.mrb[0].mxu0
  %779 = vdwg.mxu0
  %780 = vrot.lane.b32.xlu0 %v355, 96
  %v781 = vpop.permute.xlu0 %780
  %782 = vrot.lane.b32.xlu0 %v356, 96
  %v783 = vpop.permute.xlu0 %782
  %v784 = vsel %vm53, %v781, 0
  %v786 = vsel %vm53, %v783, 0
  %788 = vmatprep.subr.mxu0 0.0
  %789 = vmatpush1.msra.mxu0 %v361
  %790 = vmatprep.subr.mxu0 0.0
  %791 = vmatpush1.msra.mxu0 %v362
  %792 = vmatprep.subr.mxu0 0.0
  %793 = vmatpush1.msra.mxu0 0.0
  %794 = vmatprep.subr.mxu0 0.0
  %795 = vmatpush1.msra.mxu0 0.0
  %796 = vmatprep.subr.mxu0 0.0
  %797 = vmatpush1.msra.mxu0 0.0
  %798 = vmatprep.subr.mxu0 0.0
  %799 = vmatpush1.msra.mxu0 0.0
  %800 = vmatprep.subr.mxu0 0.0
  %801 = vmatpush1.msra.mxu0 0.0
  %802 = vmatprep.subr.mxu0 0.0
  %803 = vmatpush1.msra.mxu0 0.0
  %804 = vmatprep.subr.mxu0 0.0
  %805 = vmatpush1.msra.mxu0 0.0
  %806 = vmatprep.subr.mxu0 0.0
  %807 = vmatpush1.msra.mxu0 0.0
  %808 = vmatprep.subr.mxu0 0.0
  %809 = vmatpush1.msra.mxu0 0.0
  %810 = vmatprep.subr.mxu0 0.0
  %811 = vmatpush1.msra.mxu0 0.0
  %812 = vmatprep.subr.mxu0 0.0
  %813 = vmatpush1.msra.mxu0 0.0
  %814 = vmatprep.subr.mxu0 0.0
  %815 = vmatpush1.msra.mxu0 0.0
  %816 = vmatprep.subr.mxu0 0.0
  %817 = vmatpush1.msra.mxu0 0.0
  %818 = vmatprep.subr.mxu0 0.0
  %819 = vmatpush1.msra.mxu0 0.0
  %820 = vmatprep.subr.mxu0 0.0
  %821 = vmatpush1.msra.mxu0 0.0
  %822 = vmatprep.subr.mxu0 0.0
  %823 = vmatpush1.msra.mxu0 0.0
  %824 = vmatprep.subr.mxu0 0.0
  %825 = vmatpush1.msra.mxu0 0.0
  %826 = vmatprep.subr.mxu0 0.0
  %827 = vmatpush1.msra.mxu0 0.0
  %828 = vmatprep.subr.mxu0 0.0
  %829 = vmatpush1.msra.mxu0 0.0
  %830 = vmatprep.subr.mxu0 0.0
  %831 = vmatpush1.msra.mxu0 0.0
  %832 = vmatprep.subr.mxu0 0.0
  %833 = vmatpush1.msra.mxu0 0.0
  %834 = vmatprep.subr.mxu0 0.0
  %835 = vmatpush1.msra.mxu0 0.0
  %836 = vmatprep.subr.mxu0 0.0
  %837 = vmatpush1.msra.mxu0 0.0
  %838 = vmatprep.subr.mxu0 0.0
  %839 = vmatpush1.msra.mxu0 0.0
  %840 = vmatprep.subr.mxu0 0.0
  %841 = vmatpush1.msra.mxu0 0.0
  %842 = vmatprep.subr.mxu0 0.0
  %843 = vmatpush1.msra.mxu0 0.0
  %844 = vmatprep.subr.mxu0 0.0
  %845 = vmatpush1.msra.mxu0 0.0
  %846 = vmatprep.subr.mxu0 0.0
  %847 = vmatpush1.msra.mxu0 0.0
  %848 = vmatprep.subr.mxu0 0.0
  %849 = vmatpush1.msra.mxu0 0.0
  %850 = vmatprep.subr.mxu0 0.0
  %851 = vmatpush1.msra.mxu0 0.0
  %852 = vmatprep.mubr.f32.mxu0 0.0
  %853 = vmatmul.mubr.f32.gmra.mrb[0].mxu0 %v784
  %v854 = vpop.f32.mrb[0].mxu0
  %v855 = vadd.f32 %v772, %v854
  %v856 = vpop.f32.mrb[0].mxu0
  %857 = vmatprep.mubr.f32.mxu0 0.0
  %858 = vmatmul.mubr.f32.gmra.mrb[0].mxu0 %v786
  %v859 = vpop.f32.mrb[0].mxu0
  %v860 = vadd.f32 %v777, %v859
  %v861 = vpop.f32.mrb[0].mxu0
  %862 = vdwg.mxu0
  %863 = vst.msk [vmem:[%s8 + $0x20] sm:$0xff] %vm56, %v855
  %864 = vst.msk [vmem:[%s8 + $0x28] sm:$0xff] %vm56, %v860
  %865 = vrot.lane.b32.xlu0 %v359, 80
  %v866 = vpop.permute.xlu0 %865
  %867 = vrot.lane.b32.xlu0 %v360, 80
  %v868 = vpop.permute.xlu0 %867
  %v869 = vsel %vm53, %v866, 0
  %v871 = vsel %vm53, %v868, 0
  %873 = vmatprep.subr.mxu0 0.0
  %874 = vmatpush1.msra.mxu0 %v363
  %875 = vmatprep.subr.mxu0 0.0
  %876 = vmatpush1.msra.mxu0 %v364
  %877 = vmatprep.subr.mxu0 0.0
  %878 = vmatpush1.msra.mxu0 0.0
  %879 = vmatprep.subr.mxu0 0.0
  %880 = vmatpush1.msra.mxu0 0.0
  %881 = vmatprep.subr.mxu0 0.0
  %882 = vmatpush1.msra.mxu0 0.0
  %883 = vmatprep.subr.mxu0 0.0
  %884 = vmatpush1.msra.mxu0 0.0
  %885 = vmatprep.subr.mxu0 0.0
  %886 = vmatpush1.msra.mxu0 0.0
  %887 = vmatprep.subr.mxu0 0.0
  %888 = vmatpush1.msra.mxu0 0.0
  %889 = vmatprep.subr.mxu0 0.0
  %890 = vmatpush1.msra.mxu0 0.0
  %891 = vmatprep.subr.mxu0 0.0
  %892 = vmatpush1.msra.mxu0 0.0
  %893 = vmatprep.subr.mxu0 0.0
  %894 = vmatpush1.msra.mxu0 0.0
  %895 = vmatprep.subr.mxu0 0.0
  %896 = vmatpush1.msra.mxu0 0.0
  %897 = vmatprep.subr.mxu0 0.0
  %898 = vmatpush1.msra.mxu0 0.0
  %899 = vmatprep.subr.mxu0 0.0
  %900 = vmatpush1.msra.mxu0 0.0
  %901 = vmatprep.subr.mxu0 0.0
  %902 = vmatpush1.msra.mxu0 0.0
  %903 = vmatprep.subr.mxu0 0.0
  %904 = vmatpush1.msra.mxu0 0.0
  %905 = vmatprep.subr.mxu0 0.0
  %906 = vmatpush1.msra.mxu0 0.0
  %907 = vmatprep.subr.mxu0 0.0
  %908 = vmatpush1.msra.mxu0 0.0
  %909 = vmatprep.subr.mxu0 0.0
  %910 = vmatpush1.msra.mxu0 0.0
  %911 = vmatprep.subr.mxu0 0.0
  %912 = vmatpush1.msra.mxu0 0.0
  %913 = vmatprep.subr.mxu0 0.0
  %914 = vmatpush1.msra.mxu0 0.0
  %915 = vmatprep.subr.mxu0 0.0
  %916 = vmatpush1.msra.mxu0 0.0
  %917 = vmatprep.subr.mxu0 0.0
  %918 = vmatpush1.msra.mxu0 0.0
  %919 = vmatprep.subr.mxu0 0.0
  %920 = vmatpush1.msra.mxu0 0.0
  %921 = vmatprep.subr.mxu0 0.0
  %922 = vmatpush1.msra.mxu0 0.0
  %923 = vmatprep.subr.mxu0 0.0
  %924 = vmatpush1.msra.mxu0 0.0
  %925 = vmatprep.subr.mxu0 0.0
  %926 = vmatpush1.msra.mxu0 0.0
  %927 = vmatprep.subr.mxu0 0.0
  %928 = vmatpush1.msra.mxu0 0.0
  %929 = vmatprep.subr.mxu0 0.0
  %930 = vmatpush1.msra.mxu0 0.0
  %931 = vmatprep.subr.mxu0 0.0
  %932 = vmatpush1.msra.mxu0 0.0
  %933 = vmatprep.subr.mxu0 0.0
  %934 = vmatpush1.msra.mxu0 0.0
  %935 = vmatprep.subr.mxu0 0.0
  %936 = vmatpush1.msra.mxu0 0.0
  %937 = vmatprep.mubr.f32.mxu0 0.0
  %938 = vmatmul.mubr.f32.gmra.mrb[0].mxu0 %v869
  %v939 = vpop.f32.mrb[0].mxu0
  %v940 = vadd.f32 0.0, %v939
  %v941 = vpop.f32.mrb[0].mxu0
  %942 = vmatprep.mubr.f32.mxu0 0.0
  %943 = vmatmul.mubr.f32.gmra.mrb[0].mxu0 %v871
  %v944 = vpop.f32.mrb[0].mxu0
  %v945 = vadd.f32 0.0, %v944
  %v946 = vpop.f32.mrb[0].mxu0
  %947 = vdwg.mxu0
  %948 = vrot.lane.b32.xlu0 %v355, 80
  %v949 = vpop.permute.xlu0 %948
  %950 = vrot.lane.b32.xlu0 %v356, 80
  %v951 = vpop.permute.xlu0 %950
  %v952 = vsel %vm53, %v949, 0
  %v954 = vsel %vm53, %v951, 0
  %956 = vmatprep.subr.mxu0 0.0
  %957 = vmatpush1.msra.mxu0 %v361
  %958 = vmatprep.subr.mxu0 0.0
  %959 = vmatpush1.msra.mxu0 %v362
  %960 = vmatprep.subr.mxu0 0.0
  %961 = vmatpush1.msra.mxu0 0.0
  %962 = vmatprep.subr.mxu0 0.0
  %963 = vmatpush1.msra.mxu0 0.0
  %964 = vmatprep.subr.mxu0 0.0
  %965 = vmatpush1.msra.mxu0 0.0
  %966 = vmatprep.subr.mxu0 0.0
  %967 = vmatpush1.msra.mxu0 0.0
  %968 = vmatprep.subr.mxu0 0.0
  %969 = vmatpush1.msra.mxu0 0.0
  %970 = vmatprep.subr.mxu0 0.0
  %971 = vmatpush1.msra.mxu0 0.0
  %972 = vmatprep.subr.mxu0 0.0
  %973 = vmatpush1.msra.mxu0 0.0
  %974 = vmatprep.subr.mxu0 0.0
  %975 = vmatpush1.msra.mxu0 0.0
  %976 = vmatprep.subr.mxu0 0.0
  %977 = vmatpush1.msra.mxu0 0.0
  %978 = vmatprep.subr.mxu0 0.0
  %979 = vmatpush1.msra.mxu0 0.0
  %980 = vmatprep.subr.mxu0 0.0
  %981 = vmatpush1.msra.mxu0 0.0
  %982 = vmatprep.subr.mxu0 0.0
  %983 = vmatpush1.msra.mxu0 0.0
  %984 = vmatprep.subr.mxu0 0.0
  %985 = vmatpush1.msra.mxu0 0.0
  %986 = vmatprep.subr.mxu0 0.0
  %987 = vmatpush1.msra.mxu0 0.0
  %988 = vmatprep.subr.mxu0 0.0
  %989 = vmatpush1.msra.mxu0 0.0
  %990 = vmatprep.subr.mxu0 0.0
  %991 = vmatpush1.msra.mxu0 0.0
  %992 = vmatprep.subr.mxu0 0.0
  %993 = vmatpush1.msra.mxu0 0.0
  %994 = vmatprep.subr.mxu0 0.0
  %995 = vmatpush1.msra.mxu0 0.0
  %996 = vmatprep.subr.mxu0 0.0
  %997 = vmatpush1.msra.mxu0 0.0
  %998 = vmatprep.subr.mxu0 0.0
  %999 = vmatpush1.msra.mxu0 0.0
  %1000 = vmatprep.subr.mxu0 0.0
  %1001 = vmatpush1.msra.mxu0 0.0
  %1002 = vmatprep.subr.mxu0 0.0
  %1003 = vmatpush1.msra.mxu0 0.0
  %1004 = vmatprep.subr.mxu0 0.0
  %1005 = vmatpush1.msra.mxu0 0.0
  %1006 = vmatprep.subr.mxu0 0.0
  %1007 = vmatpush1.msra.mxu0 0.0
  %1008 = vmatprep.subr.mxu0 0.0
  %1009 = vmatpush1.msra.mxu0 0.0
  %1010 = vmatprep.subr.mxu0 0.0
  %1011 = vmatpush1.msra.mxu0 0.0
  %1012 = vmatprep.subr.mxu0 0.0
  %1013 = vmatpush1.msra.mxu0 0.0
  %1014 = vmatprep.subr.mxu0 0.0
  %1015 = vmatpush1.msra.mxu0 0.0
  %1016 = vmatprep.subr.mxu0 0.0
  %1017 = vmatpush1.msra.mxu0 0.0
  %1018 = vmatprep.subr.mxu0 0.0
  %1019 = vmatpush1.msra.mxu0 0.0
  %1020 = vmatprep.mubr.f32.mxu0 0.0
  %1021 = vmatmul.mubr.f32.gmra.mrb[0].mxu0 %v952
  %v1022 = vpop.f32.mrb[0].mxu0
  %v1023 = vadd.f32 %v940, %v1022
  %v1024 = vpop.f32.mrb[0].mxu0
  %1025 = vmatprep.mubr.f32.mxu0 0.0
  %1026 = vmatmul.mubr.f32.gmra.mrb[0].mxu0 %v954
  %v1027 = vpop.f32.mrb[0].mxu0
  %v1028 = vadd.f32 %v945, %v1027
  %v1029 = vpop.f32.mrb[0].mxu0
  %1030 = vdwg.mxu0
  %1031 = vst.msk [vmem:[%s8 + $0x30] sm:$0xff] %vm56, %v1023
  %1032 = vst.msk [vmem:[%s8 + $0x38] sm:$0xff] %vm56, %v1028
  // Predicated region
  $region34: #{cartesian_model_apply.1} parent=0 // pred_check
    _
  $region35: #{cartesian_model_apply.1} parent=0 // pred_check_branch
    %1034 = sbr.rel (0) target = $region37
  $region36: #{cartesian_model_apply.1} parent=0 // pred_region
    _
  $region37: #{cartesian_model_apply.1} parent=0 // pred_fallthru
    _
  // Predicated region
  $region38: #{cartesian_model_apply.1} parent=0 // pred_check
    _
  $region39: #{cartesian_model_apply.1} parent=0 // pred_check_branch
    %1036 = sbr.rel (0) target = $region41
  $region40: #{cartesian_model_apply.1} parent=0 // pred_region
    _
  $region41: #{cartesian_model_apply.1} parent=0 // pred_fallthru
    _

</llo_original>
